<compile_context>
chip_gen: v7x
topology: tpu7x:2x2x1
jax: 0.10.0
libtpu: 0.0.40
codegen_flags: <defaults>
</compile_context>

<pallas_src>
import jax
import jax.numpy as jnp
import numpy as np
from jax.experimental import pallas as pl
from jax.experimental.pallas import tpu as pltpu


def _round_up(x, m):
    return ((x + m - 1) // m) * m


def _compl_mul_kernel(xr_ref, xi_ref, wr_ref, wi_ref, or_ref, oi_ref):
    """One grid step = (slab, in-channel block).

    Accumulates the complex contraction over a TI-sized block of input channels
    into the resident (B, O, S) output tiles:

        out[b, o, s] += sum_i x[b, i, s] * w[i, o, s]      (complex)
    """
    xr = xr_ref[...]            # (B, TI, S)
    xi = xi_ref[...]
    wr = wr_ref[...]            # (TI, O, S)
    wi = wi_ref[...]
    ti = xr.shape[1]

    # Unrolled reduction over the channel block: each step only keeps a
    # (B, O, S) partial product live (no (B, TI, O, S) outer-product tensor),
    # bounding vreg pressure while amortizing the grid-step overhead.
    acc_r = None
    acc_i = None
    for i in range(ti):
        xr_i = xr[:, i:i + 1, :]           # (B, 1, S)
        xi_i = xi[:, i:i + 1, :]
        wr_i = wr[i][None, :, :]           # (1, O, S)
        wi_i = wi[i][None, :, :]
        pr = xr_i * wr_i - xi_i * wi_i     # (B, O, S)
        pi = xr_i * wi_i + xi_i * wr_i
        acc_r = pr if acc_r is None else acc_r + pr
        acc_i = pi if acc_i is None else acc_i + pi

    @pl.when(pl.program_id(1) == 0)
    def _():
        or_ref[...] = acc_r
        oi_ref[...] = acc_i

    @pl.when(pl.program_id(1) > 0)
    def _():
        or_ref[...] += acc_r
        oi_ref[...] += acc_i


def compl_mul2d_pallas(x_stack, w_stack):
    """einsum('zbixy,zioxy->zboxy') over complex inputs (z = 2 mode slabs).

    x_stack: (2, B, I, M1, M2) complex   (top / bottom Fourier-mode windows)
    w_stack: (2, I, O, M1, M2) complex   (weights1 / weights2)
    returns: (2, B, O, M1, M2) complex
    """
    Z, B, I, M1, M2 = x_stack.shape
    O = w_stack.shape[2]
    S = M1 * M2
    S_pad = _round_up(S, 128)               # lane-dense, unmasked stores

    # Channel-reduction blocking: whole thing in one grid step if small,
    # otherwise 8 input channels per step.
    TI = I if I <= 16 else 8
    I_pad = _round_up(I, TI)

    def split_pad(a, chan_axis):
        # complex (..., M1, M2) -> real/imag f32 with spatial flattened to the
        # last (lane) axis, padded to S_pad; channel axis padded to I_pad.
        ar = jnp.real(a).astype(jnp.float32).reshape(*a.shape[:-2], S)
        ai = jnp.imag(a).astype(jnp.float32).reshape(*a.shape[:-2], S)
        pad = [(0, 0)] * ar.ndim
        pad[-1] = (0, S_pad - S)
        pad[chan_axis] = (0, I_pad - I)
        return jnp.pad(ar, pad), jnp.pad(ai, pad)

    xr, xi = split_pad(x_stack, chan_axis=2)   # (Z, B, I_pad, S_pad)
    wr, wi = split_pad(w_stack, chan_axis=1)   # (Z, I_pad, O, S_pad)

    out_r, out_i = pl.pallas_call(
        _compl_mul_kernel,
        out_shape=(
            jax.ShapeDtypeStruct((Z, B, O, S_pad), jnp.float32),
            jax.ShapeDtypeStruct((Z, B, O, S_pad), jnp.float32),
        ),
        grid_spec=pltpu.PrefetchScalarGridSpec(
            num_scalar_prefetch=0,
            grid=(Z, I_pad // TI),             # (parallel slabs, channel blocks)
            in_specs=[
                pl.BlockSpec((None, B, TI, S_pad), lambda z, k: (z, 0, k, 0)),  # xr
                pl.BlockSpec((None, B, TI, S_pad), lambda z, k: (z, 0, k, 0)),  # xi
                pl.BlockSpec((None, TI, O, S_pad), lambda z, k: (z, k, 0, 0)),  # wr
                pl.BlockSpec((None, TI, O, S_pad), lambda z, k: (z, k, 0, 0)),  # wi
            ],
            out_specs=(
                pl.BlockSpec((None, B, O, S_pad), lambda z, k: (z, 0, 0, 0)),   # resident
                pl.BlockSpec((None, B, O, S_pad), lambda z, k: (z, 0, 0, 0)),
            ),
        ),
        compiler_params=pltpu.CompilerParams(
            dimension_semantics=("parallel", "arbitrary"),
        ),
    )(xr, xi, wr, wi)

    out = jax.lax.complex(out_r[..., :S], out_i[..., :S])
    return out.reshape(Z, B, O, M1, M2)


class SpectralConv2dPallas:
    """JAX/Pallas port of the PyTorch SpectralConv2d module."""

    def __init__(self, in_channels, out_channels, modes1, modes2, key):
        self.in_channels = in_channels
        self.out_channels = out_channels
        self.modes1 = modes1
        self.modes2 = modes2
        scale = 1.0 / (in_channels * out_channels)

        k1, k2, k3, k4 = jax.random.split(key, 4)
        shape = (in_channels, out_channels, modes1, modes2)
        # torch.rand(..., dtype=cfloat): real & imag parts uniform in [0, 1)
        self.weights1 = scale * jax.lax.complex(
            jax.random.uniform(k1, shape, jnp.float32),
            jax.random.uniform(k2, shape, jnp.float32),
        )
        self.weights2 = scale * jax.lax.complex(
            jax.random.uniform(k3, shape, jnp.float32),
            jax.random.uniform(k4, shape, jnp.float32),
        )

    def __call__(self, x, size=None):
        if size is None:
            size = (x.shape[2], x.shape[3])
        B = x.shape[0]
        m1, m2 = self.modes1, self.modes2
        H, Wd = size
        w_half = Wd // 2 + 1

        # TODO(synk): rfftn/irfftn have no Pallas TPU equivalent; they run in XLA.
        x_ft = jnp.fft.rfftn(x, axes=(2, 3))  # (B, Cin, H_in, W_in//2+1) complex64

        # Fused kernel call: slab 0 = low modes1 rows (weights1),
        #                    slab 1 = high modes1 rows (weights2).
        x_slabs = jnp.stack([x_ft[:, :, :m1, :m2], x_ft[:, :, -m1:, :m2]], axis=0)
        w_slabs = jnp.stack([self.weights1, self.weights2], axis=0)
        out = compl_mul2d_pallas(x_slabs, w_slabs)   # (2, B, O, m1, m2) complex
        top, bot = out[0], out[1]

        if H >= 2 * m1:
            # Assemble out_ft via concat + pad instead of a full-size zeros
            # buffer plus two dynamic-update-slices (saves an HBM zero-fill+copy).
            mid = jnp.zeros((B, self.out_channels, H - 2 * m1, m2), out.dtype)
            left = jnp.concatenate([top, mid, bot], axis=2)          # (B, O, H, m2)
            out_ft = jnp.pad(left, ((0, 0), (0, 0), (0, 0), (0, w_half - m2)))
        else:
            # Overlapping windows: mirror PyTorch's in-place writes exactly
            # (bottom overwrites top on the overlap).
            out_ft = jnp.zeros((B, self.out_channels, H, w_half), out.dtype)
            out_ft = out_ft.at[:, :, :m1, :m2].set(top)
            out_ft = out_ft.at[:, :, -m1:, :m2].set(bot)

        return jnp.fft.irfftn(out_ft, s=(H, Wd), axes=(2, 3))


def _reference_forward(x, w1, w2, modes1, modes2, out_channels):
    """Pure-JAX reference mirroring the PyTorch forward exactly."""
    B, _, H, W = x.shape
    x_ft = jnp.fft.rfftn(x, axes=(2, 3))
    out_ft = jnp.zeros((B, out_channels, H, W // 2 + 1), dtype=jnp.complex64)
    out_ft = out_ft.at[:, :, :modes1, :modes2].set(
        jnp.einsum("bixy,ioxy->boxy", x_ft[:, :, :modes1, :modes2], w1)
    )
    out_ft = out_ft.at[:, :, -modes1:, :modes2].set(
        jnp.einsum("bixy,ioxy->boxy", x_ft[:, :, -modes1:, :modes2], w2)
    )
    return jnp.fft.irfftn(out_ft, s=(H, W), axes=(2, 3))


if __name__ == "__main__":
    key = jax.random.PRNGKey(0)
    kx, kw = jax.random.split(key)

    B, Cin, Cout, H, W = 2, 4, 4, 16, 16
    modes1, modes2 = 4, 4

    x = jax.random.normal(kx, (B, Cin, H, W), dtype=jnp.float32)

    module = SpectralConv2dPallas(Cin, Cout, modes1, modes2, kw)
    y = jax.block_until_ready(module(x))

    y_ref = _reference_forward(x, module.weights1, module.weights2,
                               modes1, modes2, Cout)
    np.testing.assert_allclose(np.asarray(y), np.asarray(y_ref),
                               rtol=1e-4, atol=1e-5)

    print("KERNEL_OK")
</pallas_src>

<mosaic_0001>
module attributes {stable_mosaic.version = 11 : i64} {
  func.func @_compl_mul_kernel(%arg0: i32, %arg1: i32, %arg2: memref<1x2x4x128xf32, #tpu.memory_space<vmem>>, %arg3: memref<1x2x4x128xf32, #tpu.memory_space<vmem>>, %arg4: memref<1x4x4x128xf32, #tpu.memory_space<vmem>>, %arg5: memref<1x4x4x128xf32, #tpu.memory_space<vmem>>, %arg6: memref<1x2x4x128xf32, #tpu.memory_space<vmem>>, %arg7: memref<1x2x4x128xf32, #tpu.memory_space<vmem>>) attributes {dimension_semantics = [#tpu.dimension_semantics<parallel>, #tpu.dimension_semantics<arbitrary>], iteration_bounds = array<i64: 2, 1>, scalar_prefetch = 0 : i64, scratch_operands = 0 : i64, tpu.core_type = #tpu.core_type<tc>, window_params = [{transform_indices = @transform_0, window_bounds = array<i64: 1, 2, 4, 128>}, {transform_indices = @transform_1, window_bounds = array<i64: 1, 2, 4, 128>}, {transform_indices = @transform_2, window_bounds = array<i64: 1, 4, 4, 128>}, {transform_indices = @transform_3, window_bounds = array<i64: 1, 4, 4, 128>}, {transform_indices = @transform_4, window_bounds = array<i64: 1, 2, 4, 128>}, {transform_indices = @transform_5, window_bounds = array<i64: 1, 2, 4, 128>}]} {
    %c0 = arith.constant 0 : index
    %c0_0 = arith.constant 0 : index
    %c0_1 = arith.constant 0 : index
    %c0_2 = arith.constant 0 : index
    %0 = vector.load %arg2[%c0, %c0_0, %c0_1, %c0_2] : memref<1x2x4x128xf32, #tpu.memory_space<vmem>>, vector<1x2x4x128xf32>
    %1 = vector.shape_cast %0 : vector<1x2x4x128xf32> to vector<2x4x128xf32>
    %c0_3 = arith.constant 0 : index
    %c0_4 = arith.constant 0 : index
    %c0_5 = arith.constant 0 : index
    %c0_6 = arith.constant 0 : index
    %2 = vector.load %arg3[%c0_3, %c0_4, %c0_5, %c0_6] : memref<1x2x4x128xf32, #tpu.memory_space<vmem>>, vector<1x2x4x128xf32>
    %3 = vector.shape_cast %2 : vector<1x2x4x128xf32> to vector<2x4x128xf32>
    %c0_7 = arith.constant 0 : index
    %c0_8 = arith.constant 0 : index
    %c0_9 = arith.constant 0 : index
    %c0_10 = arith.constant 0 : index
    %4 = vector.load %arg4[%c0_7, %c0_8, %c0_9, %c0_10] : memref<1x4x4x128xf32, #tpu.memory_space<vmem>>, vector<1x4x4x128xf32>
    %5 = vector.shape_cast %4 : vector<1x4x4x128xf32> to vector<4x4x128xf32>
    %c0_11 = arith.constant 0 : index
    %c0_12 = arith.constant 0 : index
    %c0_13 = arith.constant 0 : index
    %c0_14 = arith.constant 0 : index
    %6 = vector.load %arg5[%c0_11, %c0_12, %c0_13, %c0_14] : memref<1x4x4x128xf32, #tpu.memory_space<vmem>>, vector<1x4x4x128xf32>
    %7 = vector.shape_cast %6 : vector<1x4x4x128xf32> to vector<4x4x128xf32>
    %8 = vector.extract_strided_slice %1 {offsets = [0, 0, 0], sizes = [2, 1, 128], strides = [1, 1, 1]} : vector<2x4x128xf32> to vector<2x1x128xf32>
    %9 = vector.extract_strided_slice %3 {offsets = [0, 0, 0], sizes = [2, 1, 128], strides = [1, 1, 1]} : vector<2x4x128xf32> to vector<2x1x128xf32>
    %10 = vector.extract_strided_slice %5 {offsets = [0, 0, 0], sizes = [1, 4, 128], strides = [1, 1, 1]} : vector<4x4x128xf32> to vector<1x4x128xf32>
    %11 = vector.shape_cast %10 : vector<1x4x128xf32> to vector<4x128xf32>
    %12 = vector.shape_cast %11 : vector<4x128xf32> to vector<1x4x128xf32>
    %13 = vector.extract_strided_slice %7 {offsets = [0, 0, 0], sizes = [1, 4, 128], strides = [1, 1, 1]} : vector<4x4x128xf32> to vector<1x4x128xf32>
    %14 = vector.shape_cast %13 : vector<1x4x128xf32> to vector<4x128xf32>
    %15 = vector.shape_cast %14 : vector<4x128xf32> to vector<1x4x128xf32>
    %16 = vector.broadcast %8 : vector<2x1x128xf32> to vector<2x4x128xf32>
    %17 = vector.broadcast %12 : vector<1x4x128xf32> to vector<2x4x128xf32>
    %18 = arith.mulf %16, %17 : vector<2x4x128xf32>
    %19 = vector.broadcast %9 : vector<2x1x128xf32> to vector<2x4x128xf32>
    %20 = vector.broadcast %15 : vector<1x4x128xf32> to vector<2x4x128xf32>
    %21 = arith.mulf %19, %20 : vector<2x4x128xf32>
    %22 = arith.subf %18, %21 : vector<2x4x128xf32>
    %23 = vector.broadcast %8 : vector<2x1x128xf32> to vector<2x4x128xf32>
    %24 = vector.broadcast %15 : vector<1x4x128xf32> to vector<2x4x128xf32>
    %25 = arith.mulf %23, %24 : vector<2x4x128xf32>
    %26 = vector.broadcast %9 : vector<2x1x128xf32> to vector<2x4x128xf32>
    %27 = vector.broadcast %12 : vector<1x4x128xf32> to vector<2x4x128xf32>
    %28 = arith.mulf %26, %27 : vector<2x4x128xf32>
    %29 = arith.addf %25, %28 : vector<2x4x128xf32>
    %30 = vector.extract_strided_slice %1 {offsets = [0, 1, 0], sizes = [2, 1, 128], strides = [1, 1, 1]} : vector<2x4x128xf32> to vector<2x1x128xf32>
    %31 = vector.extract_strided_slice %3 {offsets = [0, 1, 0], sizes = [2, 1, 128], strides = [1, 1, 1]} : vector<2x4x128xf32> to vector<2x1x128xf32>
    %32 = vector.extract_strided_slice %5 {offsets = [1, 0, 0], sizes = [1, 4, 128], strides = [1, 1, 1]} : vector<4x4x128xf32> to vector<1x4x128xf32>
    %33 = vector.shape_cast %32 : vector<1x4x128xf32> to vector<4x128xf32>
    %34 = vector.shape_cast %33 : vector<4x128xf32> to vector<1x4x128xf32>
    %35 = vector.extract_strided_slice %7 {offsets = [1, 0, 0], sizes = [1, 4, 128], strides = [1, 1, 1]} : vector<4x4x128xf32> to vector<1x4x128xf32>
    %36 = vector.shape_cast %35 : vector<1x4x128xf32> to vector<4x128xf32>
    %37 = vector.shape_cast %36 : vector<4x128xf32> to vector<1x4x128xf32>
    %38 = vector.broadcast %30 : vector<2x1x128xf32> to vector<2x4x128xf32>
    %39 = vector.broadcast %34 : vector<1x4x128xf32> to vector<2x4x128xf32>
    %40 = arith.mulf %38, %39 : vector<2x4x128xf32>
    %41 = vector.broadcast %31 : vector<2x1x128xf32> to vector<2x4x128xf32>
    %42 = vector.broadcast %37 : vector<1x4x128xf32> to vector<2x4x128xf32>
    %43 = arith.mulf %41, %42 : vector<2x4x128xf32>
    %44 = arith.subf %40, %43 : vector<2x4x128xf32>
    %45 = vector.broadcast %30 : vector<2x1x128xf32> to vector<2x4x128xf32>
    %46 = vector.broadcast %37 : vector<1x4x128xf32> to vector<2x4x128xf32>
    %47 = arith.mulf %45, %46 : vector<2x4x128xf32>
    %48 = vector.broadcast %31 : vector<2x1x128xf32> to vector<2x4x128xf32>
    %49 = vector.broadcast %34 : vector<1x4x128xf32> to vector<2x4x128xf32>
    %50 = arith.mulf %48, %49 : vector<2x4x128xf32>
    %51 = arith.addf %47, %50 : vector<2x4x128xf32>
    %52 = arith.addf %22, %44 : vector<2x4x128xf32>
    %53 = arith.addf %29, %51 : vector<2x4x128xf32>
    %54 = vector.extract_strided_slice %1 {offsets = [0, 2, 0], sizes = [2, 1, 128], strides = [1, 1, 1]} : vector<2x4x128xf32> to vector<2x1x128xf32>
    %55 = vector.extract_strided_slice %3 {offsets = [0, 2, 0], sizes = [2, 1, 128], strides = [1, 1, 1]} : vector<2x4x128xf32> to vector<2x1x128xf32>
    %56 = vector.extract_strided_slice %5 {offsets = [2, 0, 0], sizes = [1, 4, 128], strides = [1, 1, 1]} : vector<4x4x128xf32> to vector<1x4x128xf32>
    %57 = vector.shape_cast %56 : vector<1x4x128xf32> to vector<4x128xf32>
    %58 = vector.shape_cast %57 : vector<4x128xf32> to vector<1x4x128xf32>
    %59 = vector.extract_strided_slice %7 {offsets = [2, 0, 0], sizes = [1, 4, 128], strides = [1, 1, 1]} : vector<4x4x128xf32> to vector<1x4x128xf32>
    %60 = vector.shape_cast %59 : vector<1x4x128xf32> to vector<4x128xf32>
    %61 = vector.shape_cast %60 : vector<4x128xf32> to vector<1x4x128xf32>
    %62 = vector.broadcast %54 : vector<2x1x128xf32> to vector<2x4x128xf32>
    %63 = vector.broadcast %58 : vector<1x4x128xf32> to vector<2x4x128xf32>
    %64 = arith.mulf %62, %63 : vector<2x4x128xf32>
    %65 = vector.broadcast %55 : vector<2x1x128xf32> to vector<2x4x128xf32>
    %66 = vector.broadcast %61 : vector<1x4x128xf32> to vector<2x4x128xf32>
    %67 = arith.mulf %65, %66 : vector<2x4x128xf32>
    %68 = arith.subf %64, %67 : vector<2x4x128xf32>
    %69 = vector.broadcast %54 : vector<2x1x128xf32> to vector<2x4x128xf32>
    %70 = vector.broadcast %61 : vector<1x4x128xf32> to vector<2x4x128xf32>
    %71 = arith.mulf %69, %70 : vector<2x4x128xf32>
    %72 = vector.broadcast %55 : vector<2x1x128xf32> to vector<2x4x128xf32>
    %73 = vector.broadcast %58 : vector<1x4x128xf32> to vector<2x4x128xf32>
    %74 = arith.mulf %72, %73 : vector<2x4x128xf32>
    %75 = arith.addf %71, %74 : vector<2x4x128xf32>
    %76 = arith.addf %52, %68 : vector<2x4x128xf32>
    %77 = arith.addf %53, %75 : vector<2x4x128xf32>
    %78 = vector.extract_strided_slice %1 {offsets = [0, 3, 0], sizes = [2, 1, 128], strides = [1, 1, 1]} : vector<2x4x128xf32> to vector<2x1x128xf32>
    %79 = vector.extract_strided_slice %3 {offsets = [0, 3, 0], sizes = [2, 1, 128], strides = [1, 1, 1]} : vector<2x4x128xf32> to vector<2x1x128xf32>
    %80 = vector.extract_strided_slice %5 {offsets = [3, 0, 0], sizes = [1, 4, 128], strides = [1, 1, 1]} : vector<4x4x128xf32> to vector<1x4x128xf32>
    %81 = vector.shape_cast %80 : vector<1x4x128xf32> to vector<4x128xf32>
    %82 = vector.shape_cast %81 : vector<4x128xf32> to vector<1x4x128xf32>
    %83 = vector.extract_strided_slice %7 {offsets = [3, 0, 0], sizes = [1, 4, 128], strides = [1, 1, 1]} : vector<4x4x128xf32> to vector<1x4x128xf32>
    %84 = vector.shape_cast %83 : vector<1x4x128xf32> to vector<4x128xf32>
    %85 = vector.shape_cast %84 : vector<4x128xf32> to vector<1x4x128xf32>
    %86 = vector.broadcast %78 : vector<2x1x128xf32> to vector<2x4x128xf32>
    %87 = vector.broadcast %82 : vector<1x4x128xf32> to vector<2x4x128xf32>
    %88 = arith.mulf %86, %87 : vector<2x4x128xf32>
    %89 = vector.broadcast %79 : vector<2x1x128xf32> to vector<2x4x128xf32>
    %90 = vector.broadcast %85 : vector<1x4x128xf32> to vector<2x4x128xf32>
    %91 = arith.mulf %89, %90 : vector<2x4x128xf32>
    %92 = arith.subf %88, %91 : vector<2x4x128xf32>
    %93 = vector.broadcast %78 : vector<2x1x128xf32> to vector<2x4x128xf32>
    %94 = vector.broadcast %85 : vector<1x4x128xf32> to vector<2x4x128xf32>
    %95 = arith.mulf %93, %94 : vector<2x4x128xf32>
    %96 = vector.broadcast %79 : vector<2x1x128xf32> to vector<2x4x128xf32>
    %97 = vector.broadcast %82 : vector<1x4x128xf32> to vector<2x4x128xf32>
    %98 = arith.mulf %96, %97 : vector<2x4x128xf32>
    %99 = arith.addf %95, %98 : vector<2x4x128xf32>
    %100 = arith.addf %76, %92 : vector<2x4x128xf32>
    %101 = arith.addf %77, %99 : vector<2x4x128xf32>
    %c0_i32 = arith.constant 0 : i32
    %102 = arith.cmpi eq, %arg1, %c0_i32 : i32
    %103 = arith.extui %102 : i1 to i32
    %c0_i32_15 = arith.constant 0 : i32
    %104 = arith.cmpi ne, %103, %c0_i32_15 : i32
    scf.if %104 {
      %c0_18 = arith.constant 0 : index
      %c0_19 = arith.constant 0 : index
      %c0_20 = arith.constant 0 : index
      %c0_21 = arith.constant 0 : index
      %108 = vector.load %arg6[%c0_18, %c0_19, %c0_20, %c0_21] : memref<1x2x4x128xf32, #tpu.memory_space<vmem>>, vector<1x2x4x128xf32>
      %109 = vector.shape_cast %108 : vector<1x2x4x128xf32> to vector<2x4x128xf32>
      %110 = vector.shape_cast %100 : vector<2x4x128xf32> to vector<1x2x4x128xf32>
      tpu.vector_store %arg6[%c0_18, %c0_19, %c0_20, %c0_21], %110 {strides = array<i32>} : memref<1x2x4x128xf32, #tpu.memory_space<vmem>>, vector<1x2x4x128xf32>,
      %c0_22 = arith.constant 0 : index
      %c0_23 = arith.constant 0 : index
      %c0_24 = arith.constant 0 : index
      %c0_25 = arith.constant 0 : index
      %111 = vector.load %arg7[%c0_22, %c0_23, %c0_24, %c0_25] : memref<1x2x4x128xf32, #tpu.memory_space<vmem>>, vector<1x2x4x128xf32>
      %112 = vector.shape_cast %111 : vector<1x2x4x128xf32> to vector<2x4x128xf32>
      %113 = vector.shape_cast %101 : vector<2x4x128xf32> to vector<1x2x4x128xf32>
      tpu.vector_store %arg7[%c0_22, %c0_23, %c0_24, %c0_25], %113 {strides = array<i32>} : memref<1x2x4x128xf32, #tpu.memory_space<vmem>>, vector<1x2x4x128xf32>,
    } else {
    }
    %c0_i32_16 = arith.constant 0 : i32
    %105 = arith.cmpi sgt, %arg1, %c0_i32_16 : i32
    %106 = arith.extui %105 : i1 to i32
    %c0_i32_17 = arith.constant 0 : i32
    %107 = arith.cmpi ne, %106, %c0_i32_17 : i32
    scf.if %107 {
      %c0_18 = arith.constant 0 : index
      %c0_19 = arith.constant 0 : index
      %c0_20 = arith.constant 0 : index
      %c0_21 = arith.constant 0 : index
      %108 = vector.load %arg6[%c0_18, %c0_19, %c0_20, %c0_21] : memref<1x2x4x128xf32, #tpu.memory_space<vmem>>, vector<1x2x4x128xf32>
      %109 = vector.shape_cast %108 : vector<1x2x4x128xf32> to vector<2x4x128xf32>
      %110 = arith.addf %109, %100 : vector<2x4x128xf32>
      %c0_22 = arith.constant 0 : index
      %c0_23 = arith.constant 0 : index
      %c0_24 = arith.constant 0 : index
      %c0_25 = arith.constant 0 : index
      %111 = vector.load %arg6[%c0_22, %c0_23, %c0_24, %c0_25] : memref<1x2x4x128xf32, #tpu.memory_space<vmem>>, vector<1x2x4x128xf32>
      %112 = vector.shape_cast %111 : vector<1x2x4x128xf32> to vector<2x4x128xf32>
      %113 = vector.shape_cast %110 : vector<2x4x128xf32> to vector<1x2x4x128xf32>
      tpu.vector_store %arg6[%c0_22, %c0_23, %c0_24, %c0_25], %113 {strides = array<i32>} : memref<1x2x4x128xf32, #tpu.memory_space<vmem>>, vector<1x2x4x128xf32>,
      %c0_26 = arith.constant 0 : index
      %c0_27 = arith.constant 0 : index
      %c0_28 = arith.constant 0 : index
      %c0_29 = arith.constant 0 : index
      %114 = vector.load %arg7[%c0_26, %c0_27, %c0_28, %c0_29] : memref<1x2x4x128xf32, #tpu.memory_space<vmem>>, vector<1x2x4x128xf32>
      %115 = vector.shape_cast %114 : vector<1x2x4x128xf32> to vector<2x4x128xf32>
      %116 = arith.addf %115, %101 : vector<2x4x128xf32>
      %c0_30 = arith.constant 0 : index
      %c0_31 = arith.constant 0 : index
      %c0_32 = arith.constant 0 : index
      %c0_33 = arith.constant 0 : index
      %117 = vector.load %arg7[%c0_30, %c0_31, %c0_32, %c0_33] : memref<1x2x4x128xf32, #tpu.memory_space<vmem>>, vector<1x2x4x128xf32>
      %118 = vector.shape_cast %117 : vector<1x2x4x128xf32> to vector<2x4x128xf32>
      %119 = vector.shape_cast %116 : vector<2x4x128xf32> to vector<1x2x4x128xf32>
      tpu.vector_store %arg7[%c0_30, %c0_31, %c0_32, %c0_33], %119 {strides = array<i32>} : memref<1x2x4x128xf32, #tpu.memory_space<vmem>>, vector<1x2x4x128xf32>,
    } else {
    }
    return
  }
  func.func @transform_0(%arg0: i32, %arg1: i32) -> (i32, i32, i32, i32) {
    %c0_i32 = arith.constant 0 : i32
    %c0_i32_0 = arith.constant 0 : i32
    %c0_i32_1 = arith.constant 0 : i32
    return %arg0, %c0_i32, %arg1, %c0_i32_0 : i32, i32, i32, i32
  }
  func.func @transform_1(%arg0: i32, %arg1: i32) -> (i32, i32, i32, i32) {
    %c0_i32 = arith.constant 0 : i32
    %c0_i32_0 = arith.constant 0 : i32
    %c0_i32_1 = arith.constant 0 : i32
    return %arg0, %c0_i32, %arg1, %c0_i32_0 : i32, i32, i32, i32
  }
  func.func @transform_2(%arg0: i32, %arg1: i32) -> (i32, i32, i32, i32) {
    %c0_i32 = arith.constant 0 : i32
    %c0_i32_0 = arith.constant 0 : i32
    %c0_i32_1 = arith.constant 0 : i32
    return %arg0, %arg1, %c0_i32, %c0_i32_0 : i32, i32, i32, i32
  }
  func.func @transform_3(%arg0: i32, %arg1: i32) -> (i32, i32, i32, i32) {
    %c0_i32 = arith.constant 0 : i32
    %c0_i32_0 = arith.constant 0 : i32
    %c0_i32_1 = arith.constant 0 : i32
    return %arg0, %arg1, %c0_i32, %c0_i32_0 : i32, i32, i32, i32
  }
  func.func @transform_4(%arg0: i32, %arg1: i32) -> (i32, i32, i32, i32) {
    %c0_i32 = arith.constant 0 : i32
    %c0_i32_0 = arith.constant 0 : i32
    %c0_i32_1 = arith.constant 0 : i32
    %c0_i32_2 = arith.constant 0 : i32
    return %arg0, %c0_i32, %c0_i32_0, %c0_i32_1 : i32, i32, i32, i32
  }
  func.func @transform_5(%arg0: i32, %arg1: i32) -> (i32, i32, i32, i32) {
    %c0_i32 = arith.constant 0 : i32
    %c0_i32_0 = arith.constant 0 : i32
    %c0_i32_1 = arith.constant 0 : i32
    %c0_i32_2 = arith.constant 0 : i32
    return %arg0, %c0_i32, %c0_i32_0, %c0_i32_1 : i32, i32, i32, i32
  }
}

</mosaic_0001>

<llo_original>
// kernel: tpu_custom_call.1
$region0: #{tpu_custom_call.1}
  #allocation0 [shape = 'u32[]', space=smem, size = 0x4, offset = 0x4, fixed_abs, tag = 'smem constant byte address 0x4 - core index']
  #allocation1 [shape = 'u32[144,128]{1,0:T(1,128)}', space=vmem, size = 0x12000, scoped, tag = 'internal scratch']
  %s0 = inlined_call_operand.hbm [shape: f32[2,2,4,128], index: 0, kind: input, shape index: {}]
  %s1 = inlined_call_operand.hbm [shape: f32[2,2,4,128], index: 1, kind: input, shape index: {}]
  %s2 = inlined_call_operand.hbm [shape: f32[2,4,4,128], index: 2, kind: input, shape index: {}]
  %s3 = inlined_call_operand.hbm [shape: f32[2,4,4,128], index: 3, kind: input, shape index: {}]
  %s4 = inlined_call_operand.hbm [shape: f32[2,2,4,128], index: 4, kind: output, shape index: {0}]
  %s5 = inlined_call_operand.hbm [shape: f32[2,2,4,128], index: 5, kind: output, shape index: {1}]
  %6 = xla_tuple %s4, %s5
  %s7 = sld [smem:[#allocation0]]
  $region81: #{tpu_custom_call.1} parent=0
    _
  %s9 = ssub.s32 1, %s7
  %s10 = scalar_select 0, %s9, %s7
  $region1: #{tpu_custom_call.1} parent=0
    #allocation2 [shape = 'u8[8192]{0}', space=vmem, size = 0x2000, scoped, tag = 'input window, operand 0']
    #allocation3 [shape = 's32[2]{0}', space=sflag, size = 0x8, scoped, tag = 'scoped memory for tpu_custom_call.1']
    #allocation4 [shape = 's32[2]{0}', space=sflag, size = 0x8, scoped, tag = 'scoped memory for tpu_custom_call.1']
    #allocation5 [shape = 'u8[8192]{0}', space=vmem, size = 0x2000, scoped, tag = 'input window, operand 1']
    #allocation6 [shape = 's32[2]{0}', space=sflag, size = 0x8, scoped, tag = 'scoped memory for tpu_custom_call.1']
    #allocation7 [shape = 'u8[16384]{0}', space=vmem, size = 0x4000, scoped, tag = 'input window, operand 2']
    #allocation8 [shape = 'u8[16384]{0}', space=vmem, size = 0x4000, scoped, tag = 'input window, operand 3']
    #allocation9 [shape = 's32[2]{0}', space=sflag, size = 0x8, scoped, tag = 'scoped memory for tpu_custom_call.1']
    #allocation10 [shape = 'u8[8192]{0}', space=vmem, size = 0x2000, scoped, tag = 'output window, operand 0']
    #allocation11 [shape = 'u8[8192]{0}', space=vmem, size = 0x2000, scoped, tag = 'output window, operand 1']
    #allocation12 [shape = 's32[2]{0}', space=sflag, size = 0x8, scoped, tag = 'scoped memory for tpu_custom_call.1']
    %11 = vsyncpa [#allocation3], 0
    %s12 = scalar_lea.sflag [#allocation3], 1
    %13 = vsyncpa %s12, 0
    %14 = vsyncpa [#allocation6], 0
    %s15 = scalar_lea.sflag [#allocation6], 1
    %16 = vsyncpa %s15, 0
    %17 = vsyncpa [#allocation9], 0
    %s18 = scalar_lea.sflag [#allocation9], 1
    %19 = vsyncpa %s18, 0
    %20 = vsyncpa [#allocation4], 0
    %s21 = scalar_lea.sflag [#allocation4], 1
    %22 = vsyncpa %s21, 0
    %23 = vsyncpa [#allocation12], 0
    %s24 = scalar_lea.sflag [#allocation12], 1
    %25 = vsyncpa %s24, 0
    loop: start=0, step=1, limit=4
    $region2: #{tpu_custom_call.1} parent=1 // loop_pre_header
      _
    $region3: #{tpu_custom_call.1} parent=1 // loop_header
      %s27 = sphi 0, %s31
      %p28 = scmp.ge.s32.totalorder %s27, 4
      %s34 = sphi 0, %s46
      %s35 = sphi 0, %s42
      %s36 = sphi 0, %s34
      %s37 = sphi 0, %s35
      %s38 = sphi 0, %s36
      %s39 = sphi 0, %s37
      %s51 = sphi 0, %s53
      %s54 = sphi 0, %s51
      %s55 = sphi 0, %s54
      %s71 = sphi 0, %s55
      %s79 = sphi 0, %s81
      %s82 = sphi 0, %s79
      %s83 = sphi 0, %s82
      %s99 = sphi 0, %s83
      %s107 = sphi 0, %s109
      %s110 = sphi 0, %s107
      %s111 = sphi 0, %s110
      %s127 = sphi 0, %s111
      %s135 = sphi 0, %s137
      %s138 = sphi 0, %s135
      %s139 = sphi 0, %s138
      %s155 = sphi 0, %s139
      %s161 = sphi 0, %s163
      %s164 = sphi 0, %s161
      %s165 = sphi 0, %s164
      %s181 = sphi 0, %s165
      %s187 = sphi 0, %s189
      %s190 = sphi 0, %s187
      %s191 = sphi 0, %s190
      %s207 = sphi 0, %s191
    $region4: #{tpu_custom_call.1} parent=1 // loop_header_branch
      %30 = sbr.rel (%p28) target = $region8
    $region5: #{tpu_custom_call.1} parent=1 // loop_body
      %s32 = ssub.s32 %s27, 1
      %s33 = ssub.s32 %s27, 2
      %s40 = sadd.s32 1, %s35
      %p41 = scmp.ge.s32.totalorder %s40, 1
      %s42 = scalar_select %p41, 0, %s40
      %s43 = sadd.s32 1, %s34
      %s44 = scalar_select %p41, %s43, %s34
      %p45 = scmp.ge.s32.totalorder %s44, 2
      %s46 = scalar_select %p45, 0, %s44
      %s47 = ssub.s32 %s34, %s46
      %s48 = ssub.s32 %s35, %s42
      %s49 = sor.u32 %s47, %s48
      %p50 = scmp.eq.s32.totalorder %s49, 0
      %s52 = sadd.s32 %s51, 1
      %s53 = scalar_select %p50, %s51, %s52
      %p56 = pneg %p50
      %p57 = scmp.eq.s32.totalorder %s27, 1
      %p58 = por %p56, %p57
      %p59 = scmp.ne.s32.totalorder %s51, %s54
      %p60 = scmp.eq.s32.totalorder %s27, 0
      %p61 = por %p59, %p60
      %p62 = scmp.ne.s32.totalorder %s51, %s54
      %p63 = scmp.eq.s32.totalorder %s32, 1
      %p64 = por %p62, %p63
      %p65 = scmp.ne.s32.totalorder %s54, %s55
      %p66 = scmp.eq.s32.totalorder %s32, 0
      %p67 = por %p65, %p66
      %p68 = scmp.ne.s32.totalorder %s54, %s55
      %p69 = scmp.eq.s32.totalorder %s33, 1
      %p70 = por %p68, %p69
      %p72 = scmp.ne.s32.totalorder %s55, %s71
      %p73 = scmp.eq.s32.totalorder %s33, 0
      %p74 = por %p72, %p73
      %s75 = ssub.s32 %s34, %s46
      %s76 = ssub.s32 %s35, %s42
      %s77 = sor.u32 %s75, %s76
      %p78 = scmp.eq.s32.totalorder %s77, 0
      %s80 = sadd.s32 %s79, 1
      %s81 = scalar_select %p78, %s79, %s80
      %p84 = pneg %p78
      %p85 = scmp.eq.s32.totalorder %s27, 1
      %p86 = por %p84, %p85
      %p87 = scmp.ne.s32.totalorder %s79, %s82
      %p88 = scmp.eq.s32.totalorder %s27, 0
      %p89 = por %p87, %p88
      %p90 = scmp.ne.s32.totalorder %s79, %s82
      %p91 = scmp.eq.s32.totalorder %s32, 1
      %p92 = por %p90, %p91
      %p93 = scmp.ne.s32.totalorder %s82, %s83
      %p94 = scmp.eq.s32.totalorder %s32, 0
      %p95 = por %p93, %p94
      %p96 = scmp.ne.s32.totalorder %s82, %s83
      %p97 = scmp.eq.s32.totalorder %s33, 1
      %p98 = por %p96, %p97
      %p100 = scmp.ne.s32.totalorder %s83, %s99
      %p101 = scmp.eq.s32.totalorder %s33, 0
      %p102 = por %p100, %p101
      %s103 = ssub.s32 %s34, %s46
      %s104 = ssub.s32 %s35, %s42
      %s105 = sor.u32 %s103, %s104
      %p106 = scmp.eq.s32.totalorder %s105, 0
      %s108 = sadd.s32 %s107, 1
      %s109 = scalar_select %p106, %s107, %s108
      %p112 = pneg %p106
      %p113 = scmp.eq.s32.totalorder %s27, 1
      %p114 = por %p112, %p113
      %p115 = scmp.ne.s32.totalorder %s107, %s110
      %p116 = scmp.eq.s32.totalorder %s27, 0
      %p117 = por %p115, %p116
      %p118 = scmp.ne.s32.totalorder %s107, %s110
      %p119 = scmp.eq.s32.totalorder %s32, 1
      %p120 = por %p118, %p119
      %p121 = scmp.ne.s32.totalorder %s110, %s111
      %p122 = scmp.eq.s32.totalorder %s32, 0
      %p123 = por %p121, %p122
      %p124 = scmp.ne.s32.totalorder %s110, %s111
      %p125 = scmp.eq.s32.totalorder %s33, 1
      %p126 = por %p124, %p125
      %p128 = scmp.ne.s32.totalorder %s111, %s127
      %p129 = scmp.eq.s32.totalorder %s33, 0
      %p130 = por %p128, %p129
      %s131 = ssub.s32 %s34, %s46
      %s132 = ssub.s32 %s35, %s42
      %s133 = sor.u32 %s131, %s132
      %p134 = scmp.eq.s32.totalorder %s133, 0
      %s136 = sadd.s32 %s135, 1
      %s137 = scalar_select %p134, %s135, %s136
      %p140 = pneg %p134
      %p141 = scmp.eq.s32.totalorder %s27, 1
      %p142 = por %p140, %p141
      %p143 = scmp.ne.s32.totalorder %s135, %s138
      %p144 = scmp.eq.s32.totalorder %s27, 0
      %p145 = por %p143, %p144
      %p146 = scmp.ne.s32.totalorder %s135, %s138
      %p147 = scmp.eq.s32.totalorder %s32, 1
      %p148 = por %p146, %p147
      %p149 = scmp.ne.s32.totalorder %s138, %s139
      %p150 = scmp.eq.s32.totalorder %s32, 0
      %p151 = por %p149, %p150
      %p152 = scmp.ne.s32.totalorder %s138, %s139
      %p153 = scmp.eq.s32.totalorder %s33, 1
      %p154 = por %p152, %p153
      %p156 = scmp.ne.s32.totalorder %s139, %s155
      %p157 = scmp.eq.s32.totalorder %s33, 0
      %p158 = por %p156, %p157
      %s159 = ssub.s32 %s34, %s46
      %p160 = scmp.eq.s32.totalorder %s159, 0
      %s162 = sadd.s32 %s161, 1
      %s163 = scalar_select %p160, %s161, %s162
      %p166 = pneg %p160
      %p167 = scmp.eq.s32.totalorder %s27, 1
      %p168 = por %p166, %p167
      %p169 = scmp.ne.s32.totalorder %s161, %s164
      %p170 = scmp.eq.s32.totalorder %s27, 0
      %p171 = por %p169, %p170
      %p172 = scmp.ne.s32.totalorder %s161, %s164
      %p173 = scmp.eq.s32.totalorder %s32, 1
      %p174 = por %p172, %p173
      %p175 = scmp.ne.s32.totalorder %s164, %s165
      %p176 = scmp.eq.s32.totalorder %s32, 0
      %p177 = por %p175, %p176
      %p178 = scmp.ne.s32.totalorder %s164, %s165
      %p179 = scmp.eq.s32.totalorder %s33, 1
      %p180 = por %p178, %p179
      %p182 = scmp.ne.s32.totalorder %s165, %s181
      %p183 = scmp.eq.s32.totalorder %s33, 0
      %p184 = por %p182, %p183
      %s185 = ssub.s32 %s34, %s46
      %p186 = scmp.eq.s32.totalorder %s185, 0
      %s188 = sadd.s32 %s187, 1
      %s189 = scalar_select %p186, %s187, %s188
      %p192 = pneg %p186
      %p193 = scmp.eq.s32.totalorder %s27, 1
      %p194 = por %p192, %p193
      %p195 = scmp.ne.s32.totalorder %s187, %s190
      %p196 = scmp.eq.s32.totalorder %s27, 0
      %p197 = por %p195, %p196
      %p198 = scmp.ne.s32.totalorder %s187, %s190
      %p199 = scmp.eq.s32.totalorder %s32, 1
      %p200 = por %p198, %p199
      %p201 = scmp.ne.s32.totalorder %s190, %s191
      %p202 = scmp.eq.s32.totalorder %s32, 0
      %p203 = por %p201, %p202
      %p204 = scmp.ne.s32.totalorder %s190, %s191
      %p205 = scmp.eq.s32.totalorder %s33, 1
      %p206 = por %p204, %p205
      %p208 = scmp.ne.s32.totalorder %s191, %s207
      %p209 = scmp.eq.s32.totalorder %s33, 0
      %p210 = por %p208, %p209
      %p211 = scmp.le.s32.totalorder 1, %s27
      %p212 = scmp.lt.s32.totalorder %s27, 3
      %p213 = pnand %p211, %p212
      %p214 = pneg %p213
      // Predicated region
      $region9: #{tpu_custom_call.1} parent=5 // pred_check
        _
      $region10: #{tpu_custom_call.1} parent=5 // pred_check_branch
        %216 = sbr.rel (%p213) target = $region12
      $region11: #{tpu_custom_call.1} parent=5 // pred_region
        %s217 = ssub.s32 %s27, 1
      $region12: #{tpu_custom_call.1} parent=5 // pred_fallthru
        _
      %p218 = scmp.lt.s32.totalorder %s27, 2
      // Predicated region
      $region13: #{tpu_custom_call.1} parent=5 // pred_check
        %p219 = pneg %p218
      $region14: #{tpu_custom_call.1} parent=5 // pred_check_branch
        %221 = sbr.rel (%p219) target = $region16
      $region15: #{tpu_custom_call.1} parent=5 // pred_region
        // Predicated region
        $region17: #{tpu_custom_call.1} parent=15 // pred_check
          %p222 = pneg %p61
        $region18: #{tpu_custom_call.1} parent=15 // pred_check_branch
          %224 = sbr.rel (%p222) target = $region20
        $region19: #{tpu_custom_call.1} parent=15 // pred_region
          %s225 = sand.u32 %s51, 1
          %s226 = scalar_lea.sflag [#allocation3], %s225
          %s227 = sand.u32 %s51, 1
          %s228 = smul.addr %s227, 8
          %s229 = scalar_lea.vmem [#allocation2], %s228
          %s231 = ssub.s32 128, 128
          %232 = vsyncadd %s226, %s231
          %s233 = smul.addr %s34, 2
          %s234 = sadd.s32 %s35, %s233
          %s235 = smul.addr %s234, 64
          %s236 = scalar_lea.hbm %s0, %s235
          %s237 = sshll.u32 %s229, 4
          %s238 = int_to_ptr.vmem [resolvable:$true] %s237
          %243 = dma.hbm_to_vmem [thread:$0]  %s236, 128, %s238, %s226, 64, 64, 4
        $region20: #{tpu_custom_call.1} parent=15 // pred_fallthru
          _
        // Predicated region
        $region21: #{tpu_custom_call.1} parent=15 // pred_check
          %p244 = pneg %p89
        $region22: #{tpu_custom_call.1} parent=15 // pred_check_branch
          %246 = sbr.rel (%p244) target = $region24
        $region23: #{tpu_custom_call.1} parent=15 // pred_region
          %s247 = sand.u32 %s27, 1
          %s248 = scalar_lea.sflag [#allocation6], %s247
          %s249 = sand.u32 %s79, 1
          %s250 = smul.addr %s249, 8
          %s251 = scalar_lea.vmem [#allocation5], %s250
          %s253 = ssub.s32 128, 128
          %254 = vsyncadd %s248, %s253
          %s255 = smul.addr %s34, 2
          %s256 = sadd.s32 %s35, %s255
          %s257 = smul.addr %s256, 64
          %s258 = scalar_lea.hbm %s1, %s257
          %s259 = sshll.u32 %s251, 4
          %s260 = int_to_ptr.vmem [resolvable:$true] %s259
          %265 = dma.hbm_to_vmem [thread:$0]  %s258, 128, %s260, %s248, 64, 64, 4
        $region24: #{tpu_custom_call.1} parent=15 // pred_fallthru
          _
        // Predicated region
        $region25: #{tpu_custom_call.1} parent=15 // pred_check
          %p266 = pneg %p117
        $region26: #{tpu_custom_call.1} parent=15 // pred_check_branch
          %268 = sbr.rel (%p266) target = $region28
        $region27: #{tpu_custom_call.1} parent=15 // pred_region
          %s269 = sand.u32 %s27, 1
          %s270 = scalar_lea.sflag [#allocation6], %s269
          %s271 = sand.u32 %s107, 1
          %s272 = smul.addr %s271, 16
          %s273 = scalar_lea.vmem [#allocation7], %s272
          %s274 = smul.u32 4, %s35
          %s276 = ssub.s32 256, 256
          %277 = vsyncadd %s270, %s276
          %s278 = smul.addr %s34, 4
          %s279 = sadd.s32 %s274, %s278
          %s280 = smul.addr %s279, 64
          %s281 = scalar_lea.hbm %s2, %s280
          %s282 = sshll.u32 %s273, 4
          %s283 = int_to_ptr.vmem [resolvable:$true] %s282
          %288 = dma.hbm_to_vmem [thread:$0]  %s281, 256, %s283, %s270, 64, 64, 4
        $region28: #{tpu_custom_call.1} parent=15 // pred_fallthru
          _
        // Predicated region
        $region29: #{tpu_custom_call.1} parent=15 // pred_check
          %p289 = pneg %p145
        $region30: #{tpu_custom_call.1} parent=15 // pred_check_branch
          %291 = sbr.rel (%p289) target = $region32
        $region31: #{tpu_custom_call.1} parent=15 // pred_region
          %s292 = sand.u32 %s135, 1
          %s293 = scalar_lea.sflag [#allocation9], %s292
          %s294 = sand.u32 %s135, 1
          %s295 = smul.addr %s294, 16
          %s296 = scalar_lea.vmem [#allocation8], %s295
          %s297 = smul.u32 4, %s35
          %s299 = ssub.s32 256, 256
          %300 = vsyncadd %s293, %s299
          %s301 = smul.addr %s34, 4
          %s302 = sadd.s32 %s297, %s301
          %s303 = smul.addr %s302, 64
          %s304 = scalar_lea.hbm %s3, %s303
          %s305 = sshll.u32 %s296, 4
          %s306 = int_to_ptr.vmem [resolvable:$true] %s305
          %311 = dma.hbm_to_vmem [thread:$0]  %s304, 256, %s306, %s293, 64, 64, 4
        $region32: #{tpu_custom_call.1} parent=15 // pred_fallthru
          _
      $region16: #{tpu_custom_call.1} parent=5 // pred_fallthru
        _
      %p312 = scmp.le.s32.totalorder 1, %s27
      %p313 = scmp.lt.s32.totalorder %s27, 3
      %p314 = pnand %p312, %p313
      %p315 = pneg %p314
      // Predicated region
      $region33: #{tpu_custom_call.1} parent=5 // pred_check
        _
      $region34: #{tpu_custom_call.1} parent=5 // pred_check_branch
        %317 = sbr.rel (%p314) target = $region36
      $region35: #{tpu_custom_call.1} parent=5 // pred_region
        %s318 = ssub.s32 %s27, 1
        %s319 = sand.u32 %s54, 1
        %s320 = scalar_lea.sflag [#allocation3], %s319
        %s321 = sand.u32 %s54, 1
        %s322 = smul.addr %s321, 8
        %s323 = scalar_lea.vmem [#allocation2], %s322
        // Predicated region
        $region37: #{tpu_custom_call.1} parent=35 // pred_check
          %p324 = pneg %p67
        $region38: #{tpu_custom_call.1} parent=35 // pred_check_branch
          %326 = sbr.rel (%p324) target = $region40
        $region39: #{tpu_custom_call.1} parent=35 // pred_region
          %327 = dma.done %s320, 128
        $region40: #{tpu_custom_call.1} parent=35 // pred_fallthru
          _
        %s328 = sand.u32 %s32, 1
        %s329 = scalar_lea.sflag [#allocation6], %s328
        %s330 = sand.u32 %s82, 1
        %s331 = smul.addr %s330, 8
        %s332 = scalar_lea.vmem [#allocation5], %s331
        // Predicated region
        $region41: #{tpu_custom_call.1} parent=35 // pred_check
          %p333 = pneg %p95
        $region42: #{tpu_custom_call.1} parent=35 // pred_check_branch
          %335 = sbr.rel (%p333) target = $region44
        $region43: #{tpu_custom_call.1} parent=35 // pred_region
          %336 = dma.done %s329, 128
        $region44: #{tpu_custom_call.1} parent=35 // pred_fallthru
          _
        %s337 = sand.u32 %s32, 1
        %s338 = scalar_lea.sflag [#allocation6], %s337
        %s339 = sand.u32 %s110, 1
        %s340 = smul.addr %s339, 16
        %s341 = scalar_lea.vmem [#allocation7], %s340
        // Predicated region
        $region45: #{tpu_custom_call.1} parent=35 // pred_check
          %p342 = pneg %p123
        $region46: #{tpu_custom_call.1} parent=35 // pred_check_branch
          %344 = sbr.rel (%p342) target = $region48
        $region47: #{tpu_custom_call.1} parent=35 // pred_region
          %345 = dma.done %s338, 256
        $region48: #{tpu_custom_call.1} parent=35 // pred_fallthru
          _
        %s346 = sand.u32 %s138, 1
        %s347 = scalar_lea.sflag [#allocation9], %s346
        %s348 = sand.u32 %s138, 1
        %s349 = smul.addr %s348, 16
        %s350 = scalar_lea.vmem [#allocation8], %s349
        // Predicated region
        $region49: #{tpu_custom_call.1} parent=35 // pred_check
          %p351 = pneg %p151
        $region50: #{tpu_custom_call.1} parent=35 // pred_check_branch
          %353 = sbr.rel (%p351) target = $region52
        $region51: #{tpu_custom_call.1} parent=35 // pred_region
          %354 = dma.done %s347, 256
        $region52: #{tpu_custom_call.1} parent=35 // pred_fallthru
          _
        %s355 = sand.u32 %s54, 1
        %s356 = scalar_lea.sflag [#allocation3], %s355
        %s357 = sand.u32 %s54, 1
        %s358 = smul.addr %s357, 8
        %s359 = scalar_lea.vmem [#allocation2], %s358
        %p360 = pneg %p67
        %p361 = pneg %p64
        %s362 = sand.u32 %s32, 1
        %s363 = scalar_lea.sflag [#allocation6], %s362
        %s364 = sand.u32 %s82, 1
        %s365 = smul.addr %s364, 8
        %s366 = scalar_lea.vmem [#allocation5], %s365
        %p367 = pneg %p95
        %p368 = pneg %p92
        %s369 = sand.u32 %s32, 1
        %s370 = scalar_lea.sflag [#allocation6], %s369
        %s371 = sand.u32 %s110, 1
        %s372 = smul.addr %s371, 16
        %s373 = scalar_lea.vmem [#allocation7], %s372
        %p374 = pneg %p123
        %p375 = pneg %p120
        %s376 = sand.u32 %s138, 1
        %s377 = scalar_lea.sflag [#allocation9], %s376
        %s378 = sand.u32 %s138, 1
        %s379 = smul.addr %s378, 16
        %s380 = scalar_lea.vmem [#allocation8], %s379
        %p381 = pneg %p151
        %p382 = pneg %p148
        %p383 = pneg %p177
        %p384 = pneg %p174
        %s385 = sand.u32 %s164, 1
        %s386 = scalar_lea.sflag [#allocation4], %s385
        %s387 = sand.u32 %s164, 1
        %s388 = smul.addr %s387, 8
        %s389 = scalar_lea.vmem [#allocation10], %s388
        %p390 = pneg %p203
        %p391 = pneg %p200
        %s392 = sand.u32 %s190, 1
        %s393 = scalar_lea.sflag [#allocation12], %s392
        %s394 = sand.u32 %s190, 1
        %s395 = smul.addr %s394, 8
        %s396 = scalar_lea.vmem [#allocation11], %s395
        %s397 = smul.u32 4, %s37
        %s398 = smul.u32 4, %s37
        %v399 = vld [vmem:[%s323] sm:$0xf]
        %v400 = vld [vmem:[%s323 + $0x4] sm:$0xf]
        %v401 = vld [vmem:[%s332] sm:$0xf]
        %v402 = vld [vmem:[%s332 + $0x4] sm:$0xf]
        %v403 = vld [vmem:[%s341] sm:$0xf]
        %v404 = vld [vmem:[%s341 + $0x4] sm:$0xf]
        %v405 = vld [vmem:[%s341 + $0x8] sm:$0xf]
        %v406 = vld [vmem:[%s341 + $0xc] sm:$0xf]
        %v407 = vld [vmem:[%s350] sm:$0xf]
        %v408 = vld [vmem:[%s350 + $0x4] sm:$0xf]
        %v409 = vld [vmem:[%s350 + $0x8] sm:$0xf]
        %v410 = vld [vmem:[%s350 + $0xc] sm:$0xf]
        %v411 = vlaneseq
        %v412 = vshrl.u32 %v411, 7
        %v413 = vsub.s32 0, %v412
        %v414 = vrot.slane %v399, %v413
        %v415 = vlaneseq
        %v416 = vshrl.u32 %v415, 7
        %v417 = vsub.s32 0, %v416
        %v418 = vrot.slane %v400, %v417
        %v419 = vmul.f32 %v414, %v403
        %v420 = vmul.f32 %v418, %v403
        %v421 = vlaneseq
        %v422 = vshrl.u32 %v421, 7
        %v423 = vsub.s32 0, %v422
        %v424 = vrot.slane %v401, %v423
        %v425 = vlaneseq
        %v426 = vshrl.u32 %v425, 7
        %v427 = vsub.s32 0, %v426
        %v428 = vrot.slane %v402, %v427
        %v429 = vmul.f32 %v424, %v407
        %v430 = vmul.f32 %v428, %v407
        %v431 = vsub.f32 %v419, %v429
        %v432 = vsub.f32 %v420, %v430
        %v433 = vmul.f32 %v414, %v407
        %v434 = vmul.f32 %v418, %v407
        %v435 = vmul.f32 %v424, %v403
        %v436 = vmul.f32 %v428, %v403
        %v437 = vadd.f32 %v433, %v435
        %v438 = vadd.f32 %v434, %v436
        %v439 = vlaneseq
        %v440 = vshrl.u32 %v439, 7
        %v441 = vsub.s32 1, %v440
        %v442 = vrot.slane %v399, %v441
        %v443 = vlaneseq
        %v444 = vshrl.u32 %v443, 7
        %v445 = vsub.s32 1, %v444
        %v446 = vrot.slane %v400, %v445
        %v447 = vmul.f32 %v442, %v404
        %v448 = vmul.f32 %v446, %v404
        %v449 = vlaneseq
        %v450 = vshrl.u32 %v449, 7
        %v451 = vsub.s32 1, %v450
        %v452 = vrot.slane %v401, %v451
        %v453 = vlaneseq
        %v454 = vshrl.u32 %v453, 7
        %v455 = vsub.s32 1, %v454
        %v456 = vrot.slane %v402, %v455
        %v457 = vmul.f32 %v452, %v408
        %v458 = vmul.f32 %v456, %v408
        %v459 = vsub.f32 %v447, %v457
        %v460 = vsub.f32 %v448, %v458
        %v461 = vmul.f32 %v442, %v408
        %v462 = vmul.f32 %v446, %v408
        %v463 = vmul.f32 %v452, %v404
        %v464 = vmul.f32 %v456, %v404
        %v465 = vadd.f32 %v461, %v463
        %v466 = vadd.f32 %v462, %v464
        %v467 = vadd.f32 %v431, %v459
        %v468 = vadd.f32 %v432, %v460
        %v469 = vadd.f32 %v437, %v465
        %v470 = vadd.f32 %v438, %v466
        %v471 = vlaneseq
        %v472 = vshrl.u32 %v471, 7
        %v473 = vsub.s32 2, %v472
        %v474 = vrot.slane %v399, %v473
        %v475 = vlaneseq
        %v476 = vshrl.u32 %v475, 7
        %v477 = vsub.s32 2, %v476
        %v478 = vrot.slane %v400, %v477
        %v479 = vmul.f32 %v474, %v405
        %v480 = vmul.f32 %v478, %v405
        %v481 = vlaneseq
        %v482 = vshrl.u32 %v481, 7
        %v483 = vsub.s32 2, %v482
        %v484 = vrot.slane %v401, %v483
        %v485 = vlaneseq
        %v486 = vshrl.u32 %v485, 7
        %v487 = vsub.s32 2, %v486
        %v488 = vrot.slane %v402, %v487
        %v489 = vmul.f32 %v484, %v409
        %v490 = vmul.f32 %v488, %v409
        %v491 = vsub.f32 %v479, %v489
        %v492 = vsub.f32 %v480, %v490
        %v493 = vmul.f32 %v474, %v409
        %v494 = vmul.f32 %v478, %v409
        %v495 = vmul.f32 %v484, %v405
        %v496 = vmul.f32 %v488, %v405
        %v497 = vadd.f32 %v493, %v495
        %v498 = vadd.f32 %v494, %v496
        %v499 = vadd.f32 %v467, %v491
        %v500 = vadd.f32 %v468, %v492
        %v501 = vadd.f32 %v469, %v497
        %v502 = vadd.f32 %v470, %v498
        %v503 = vlaneseq
        %v504 = vshrl.u32 %v503, 7
        %v505 = vsub.s32 3, %v504
        %v506 = vrot.slane %v399, %v505
        %v507 = vlaneseq
        %v508 = vshrl.u32 %v507, 7
        %v509 = vsub.s32 3, %v508
        %v510 = vrot.slane %v400, %v509
        %v511 = vmul.f32 %v506, %v406
        %v512 = vmul.f32 %v510, %v406
        %v513 = vlaneseq
        %v514 = vshrl.u32 %v513, 7
        %v515 = vsub.s32 3, %v514
        %v516 = vrot.slane %v401, %v515
        %v517 = vlaneseq
        %v518 = vshrl.u32 %v517, 7
        %v519 = vsub.s32 3, %v518
        %v520 = vrot.slane %v402, %v519
        %v521 = vmul.f32 %v516, %v410
        %v522 = vmul.f32 %v520, %v410
        %v523 = vsub.f32 %v511, %v521
        %v524 = vsub.f32 %v512, %v522
        %v525 = vmul.f32 %v506, %v410
        %v526 = vmul.f32 %v510, %v410
        %v527 = vmul.f32 %v516, %v406
        %v528 = vmul.f32 %v520, %v406
        %v529 = vadd.f32 %v525, %v527
        %v530 = vadd.f32 %v526, %v528
        %v531 = vadd.f32 %v499, %v523
        %v532 = vadd.f32 %v500, %v524
        %v533 = vadd.f32 %v501, %v529
        %v534 = vadd.f32 %v502, %v530
        %p535 = scmp.eq.s32.totalorder %s37, 0
        // Predicated region
        $region53: #{tpu_custom_call.1} parent=35 // pred_check
          %p536 = pneg %p535
        $region54: #{tpu_custom_call.1} parent=35 // pred_check_branch
          %538 = sbr.rel (%p536) target = $region56
        $region55: #{tpu_custom_call.1} parent=35 // pred_region
          %539 = vst [vmem:[%s389] sm:$0xf] %v531
          %540 = vst [vmem:[%s389 + $0x4] sm:$0xf] %v532
          %541 = vst [vmem:[%s396] sm:$0xf] %v533
          %542 = vst [vmem:[%s396 + $0x4] sm:$0xf] %v534
        $region56: #{tpu_custom_call.1} parent=35 // pred_fallthru
          _
        %p543 = scmp.gt.s32.totalorder %s37, 0
        // Predicated region
        $region57: #{tpu_custom_call.1} parent=35 // pred_check
          %p544 = pneg %p543
        $region58: #{tpu_custom_call.1} parent=35 // pred_check_branch
          %546 = sbr.rel (%p544) target = $region60
        $region59: #{tpu_custom_call.1} parent=35 // pred_region
          %v547 = vld [vmem:[%s389] sm:$0xf]
          %v548 = vld [vmem:[%s389 + $0x4] sm:$0xf]
          %v549 = vadd.f32 %v547, %v531
          %v550 = vadd.f32 %v548, %v532
          %551 = vst [vmem:[%s389] sm:$0xf] %v549
          %552 = vst [vmem:[%s389 + $0x4] sm:$0xf] %v550
          %v553 = vld [vmem:[%s396] sm:$0xf]
          %v554 = vld [vmem:[%s396 + $0x4] sm:$0xf]
          %v555 = vadd.f32 %v553, %v533
          %v556 = vadd.f32 %v554, %v534
          %557 = vst [vmem:[%s396] sm:$0xf] %v555
          %558 = vst [vmem:[%s396 + $0x4] sm:$0xf] %v556
        $region60: #{tpu_custom_call.1} parent=35 // pred_fallthru
          _
        %s559 = sand.u32 %s164, 1
        %s560 = scalar_lea.sflag [#allocation4], %s559
        %s561 = sand.u32 %s164, 1
        %s562 = smul.addr %s561, 8
        %s563 = scalar_lea.vmem [#allocation10], %s562
        %s564 = sand.u32 %s190, 1
        %s565 = scalar_lea.sflag [#allocation12], %s564
        %s566 = sand.u32 %s190, 1
        %s567 = smul.addr %s566, 8
        %s568 = scalar_lea.vmem [#allocation11], %s567
        // Predicated region
        $region61: #{tpu_custom_call.1} parent=35 // pred_check
          %p569 = pneg %p174
        $region62: #{tpu_custom_call.1} parent=35 // pred_check_branch
          %571 = sbr.rel (%p569) target = $region64
        $region63: #{tpu_custom_call.1} parent=35 // pred_region
          %s573 = ssub.s32 128, 128
          %574 = vsyncadd %s560, %s573
          %s575 = smul.addr %s36, 2
          %s576 = smul.addr %s575, 64
          %s577 = scalar_lea.hbm %s4, %s576
          %s578 = sshll.u32 %s563, 4
          %s579 = int_to_ptr.vmem [resolvable:$true] %s578
          %584 = dma.vmem_to_hbm [thread:$0]  %s579, 128, %s577, %s560, 64, 64, 4
        $region64: #{tpu_custom_call.1} parent=35 // pred_fallthru
          _
        // Predicated region
        $region65: #{tpu_custom_call.1} parent=35 // pred_check
          %p585 = pneg %p200
        $region66: #{tpu_custom_call.1} parent=35 // pred_check_branch
          %587 = sbr.rel (%p585) target = $region68
        $region67: #{tpu_custom_call.1} parent=35 // pred_region
          %s589 = ssub.s32 128, 128
          %590 = vsyncadd %s565, %s589
          %s591 = smul.addr %s36, 2
          %s592 = smul.addr %s591, 64
          %s593 = scalar_lea.hbm %s5, %s592
          %s594 = sshll.u32 %s568, 4
          %s595 = int_to_ptr.vmem [resolvable:$true] %s594
          %600 = dma.vmem_to_hbm [thread:$0]  %s595, 128, %s593, %s565, 64, 64, 4
        $region68: #{tpu_custom_call.1} parent=35 // pred_fallthru
          _
      $region36: #{tpu_custom_call.1} parent=5 // pred_fallthru
        _
      %p601 = scmp.le.s32.totalorder 2, %s27
      // Predicated region
      $region69: #{tpu_custom_call.1} parent=5 // pred_check
        %p602 = pneg %p601
      $region70: #{tpu_custom_call.1} parent=5 // pred_check_branch
        %604 = sbr.rel (%p602) target = $region72
      $region71: #{tpu_custom_call.1} parent=5 // pred_region
        %s605 = ssub.s32 %s27, 2
        // Predicated region
        $region73: #{tpu_custom_call.1} parent=71 // pred_check
          %p606 = pneg %p180
        $region74: #{tpu_custom_call.1} parent=71 // pred_check_branch
          %608 = sbr.rel (%p606) target = $region76
        $region75: #{tpu_custom_call.1} parent=71 // pred_region
          %s609 = sand.u32 %s165, 1
          %s610 = scalar_lea.sflag [#allocation4], %s609
          %s611 = sand.u32 %s165, 1
          %s612 = smul.addr %s611, 8
          %s613 = scalar_lea.vmem [#allocation10], %s612
          %614 = dma.done %s610, 128
        $region76: #{tpu_custom_call.1} parent=71 // pred_fallthru
          _
        // Predicated region
        $region77: #{tpu_custom_call.1} parent=71 // pred_check
          %p615 = pneg %p206
        $region78: #{tpu_custom_call.1} parent=71 // pred_check_branch
          %617 = sbr.rel (%p615) target = $region80
        $region79: #{tpu_custom_call.1} parent=71 // pred_region
          %s618 = sand.u32 %s191, 1
          %s619 = scalar_lea.sflag [#allocation12], %s618
          %s620 = sand.u32 %s191, 1
          %s621 = smul.addr %s620, 8
          %s622 = scalar_lea.vmem [#allocation11], %s621
          %623 = dma.done %s619, 128
        $region80: #{tpu_custom_call.1} parent=71 // pred_fallthru
          _
      $region72: #{tpu_custom_call.1} parent=5 // pred_fallthru
        _
    $region6: #{tpu_custom_call.1} parent=1 // loop_footer
      %s31 = sadd.s32 1, %s27
    $region7: #{tpu_custom_call.1} parent=1 // loop_footer_branch
      %26 = sbr.rel target = $region3
    $region8: #{tpu_custom_call.1} parent=1 // loop_exit
      _
    %624 = vsyncpa [#allocation3], 1
    %s625 = scalar_lea.sflag [#allocation3], 1
    %626 = vsyncpa %s625, 1
    %627 = vsyncpa [#allocation6], 1
    %s628 = scalar_lea.sflag [#allocation6], 1
    %629 = vsyncpa %s628, 1
    %630 = vsyncpa [#allocation9], 1
    %s631 = scalar_lea.sflag [#allocation9], 1
    %632 = vsyncpa %s631, 1
    %633 = vsyncpa [#allocation4], 1
    %s634 = scalar_lea.sflag [#allocation4], 1
    %635 = vsyncpa %s634, 1
    %636 = vsyncpa [#allocation12], 1
    %s637 = scalar_lea.sflag [#allocation12], 1
    %638 = vsyncpa %s637, 1

</llo_original>
